<compile_context>
chip_gen: v6e
topology: v6e:2x2x1
jax: 0.10.0
libtpu: 0.0.40
codegen_flags: <defaults>
</compile_context>

<pallas_src>
import functools

import jax
import jax.numpy as jnp
from jax.experimental import pallas as pl
from jax.experimental.pallas import tpu as pltpu

EPS_IN = 1e-3   # InstanceNorm2d eps (as in the module)
EPS_BN = 1e-5   # BatchNorm2d default eps
LANE = 128


# ----------------------------- kernel helpers ------------------------------ #
def _in_bn_relu(v, v32, scale, shift, *, inv_n, pad_cnt, mask, tail_dtype):
    """InstanceNorm (biased var, eps=1e-3) fused with eval-mode BN and ReLU.

    v      : activation in the elementwise-tail dtype (bf16 on v6e/v7x).
    v32    : same data in f32 (statistics are always accumulated in f32).
    Pad lanes of v / v32 are guaranteed zero, so the mean is exact with the
    true-N inv_n and the variance only needs the analytic (Np-N)*mu^2
    correction -- no full-width select on the stats path.
    mask   : optional (1, Np) bool; zeroes pad lanes of the returned h so the
             *next* InstanceNorm's zero-pad invariant holds.
    """
    mu = jnp.sum(v32, axis=-1, keepdims=True) * inv_n           # (C,1) f32, exact
    vc = v32 - mu
    ssq = jnp.sum(vc * vc, axis=-1, keepdims=True)
    if pad_cnt:
        # pad lanes of v32 are 0 -> they contributed (Np-N) * mu^2 to ssq
        ssq = ssq - float(pad_cnt) * (mu * mu)
    var = ssq * inv_n
    a = scale * jax.lax.rsqrt(var + EPS_IN)                     # (C,1) f32
    b = shift - mu * a                                          # IN mean folded in
    h = jnp.maximum(v * a.astype(tail_dtype) + b.astype(tail_dtype), 0.0)
    if mask is not None:
        h = jnp.where(mask, h, 0.0)
    return h


def _trunk(x_mm, x32, s1, t1, w1, s2, t2, w2, *, inv_n, pad_cnt, mask,
           mm_dtype, tail_dtype):
    """IN -> BN -> ReLU -> conv1 (bias dropped: cancelled by the next IN's mean
    subtraction) -> IN -> BN -> ReLU -> conv2 (bias added by the caller)."""
    f32 = jnp.float32
    v1 = x32 if tail_dtype == f32 else x_mm.astype(tail_dtype)
    h1 = _in_bn_relu(v1, x32, s1, t1, inv_n=inv_n, pad_cnt=pad_cnt, mask=mask,
                     tail_dtype=tail_dtype)
    y = jnp.dot(w1, h1.astype(mm_dtype), preferred_element_type=f32)
    v2 = y if tail_dtype == f32 else y.astype(tail_dtype)
    h2 = _in_bn_relu(v2, y, s2, t2, inv_n=inv_n, pad_cnt=pad_cnt, mask=None,
                     tail_dtype=tail_dtype)
    return jnp.dot(w2, h2.astype(mm_dtype), preferred_element_type=f32)


# ------------------------------ Pallas kernels ------------------------------ #
def _kernel_identity(x_ref, s1_ref, t1_ref, w1_ref, s2_ref, t2_ref, w2_ref,
                     b_ref, o_ref, *, inv_n, pad_cnt, n_valid, mm_dtype,
                     tail_dtype):
    # out_channels == channels: residual is x itself (no identity matmul).
    x = x_ref[0]                                   # (C, Np) in the HBM/IO dtype
    x32 = x.astype(jnp.float32)
    mask = None
    if pad_cnt:
        lane = jax.lax.broadcasted_iota(jnp.int32, (1, x.shape[-1]), 1)
        mask = lane < n_valid
    y2 = _trunk(x, x32, s1_ref[...], t1_ref[...], w1_ref[...],
                s2_ref[...], t2_ref[...], w2_ref[...],
                inv_n=inv_n, pad_cnt=pad_cnt, mask=mask,
                mm_dtype=mm_dtype, tail_dtype=tail_dtype)
    # single store (b = conv2 bias)
    o_ref[0] = (x32 + y2 + b_ref[...]).astype(o_ref.dtype)


def _kernel_shortcut(x_ref, s1_ref, t1_ref, w1_ref, s2_ref, t2_ref, w2_ref,
                     b_ref, ws_ref, o_ref, *, inv_n, pad_cnt, n_valid,
                     mm_dtype, tail_dtype):
    # out_channels != channels: shot_cut 1x1 conv path.
    x = x_ref[0]                                   # (C, Np) in the HBM/IO dtype
    x32 = x.astype(jnp.float32)
    mask = None
    if pad_cnt:
        lane = jax.lax.broadcasted_iota(jnp.int32, (1, x.shape[-1]), 1)
        mask = lane < n_valid
    y2 = _trunk(x, x32, s1_ref[...], t1_ref[...], w1_ref[...],
                s2_ref[...], t2_ref[...], w2_ref[...],
                inv_n=inv_n, pad_cnt=pad_cnt, mask=mask,
                mm_dtype=mm_dtype, tail_dtype=tail_dtype)
    sc = jnp.dot(ws_ref[...], x.astype(mm_dtype),
                 preferred_element_type=jnp.float32)
    # single store (b = b2 + bs, pre-added in the wrapper); no o_ref round-trip
    o_ref[0] = (sc + y2 + b_ref[...]).astype(o_ref.dtype)


# ------------------------------- JAX wrapper -------------------------------- #
def _vmem_cap_bytes():
    """Generation-aware VMEM cap (v5e/v6e: 128 MiB, v7x: 64 MiB per TC)."""
    try:
        return int(pltpu.get_tpu_info().vmem_capacity_bytes)
    except Exception:
        return 64 << 20   # conservative fallback = smallest (v7x per-TC)


def pointcn_forward(x, params, use_bf16=True, bf16_tail=None,
                    keep_padded_output=False):
    """x: (B, C, H, W) float32 NCHW.

    use_bf16   : bf16 at the HBM boundary (activation in/out) and on the MXU.
    bf16_tail  : run the post-stats elementwise tail in bf16 (good on v6e/v7x;
                 keep False on v5e, which has no bf16 VPU). Default: use_bf16.
    keep_padded_output : when N % 128 != 0, skip the wrapper-side slice and
                 return (B, OC, Np) so a downstream Pallas layer can consume
                 the padded slab without an extra HBM pass.
    """
    if bf16_tail is None:
        bf16_tail = use_bf16

    B, C, H, W = x.shape
    N = H * W
    OC = params["w1"].shape[0]

    io_dtype = jnp.bfloat16 if use_bf16 else jnp.float32
    mm_dtype = io_dtype
    tail_dtype = jnp.bfloat16 if bf16_tail else jnp.float32

    # Pad spatial axis to a lane-dense multiple of 128.
    # TODO(synk): prefer N % 128 == 0 upstream; the pad (and slice below) are
    # extra XLA HBM passes on this otherwise single-pass, HBM-bound layer.
    Np = ((N + LANE - 1) // LANE) * LANE
    pad_cnt = Np - N

    xr = x.reshape(B, C, N).astype(io_dtype)
    if pad_cnt:
        xr = jnp.pad(xr, ((0, 0), (0, 0), (0, pad_cnt)))

    # Fold eval-mode BatchNorm into per-channel scale / shift (glue).
    def fold_bn(gamma, beta, rm, rv):
        s = gamma / jnp.sqrt(rv + EPS_BN)
        return (s.reshape(-1, 1).astype(jnp.float32),
                (beta - rm * s).reshape(-1, 1).astype(jnp.float32))

    s1, t1 = fold_bn(params["bn1_gamma"], params["bn1_beta"],
                     params["bn1_rm"], params["bn1_rv"])
    s2, t2 = fold_bn(params["bn2_gamma"], params["bn2_beta"],
                     params["bn2_rm"], params["bn2_rv"])

    # conv1 bias (b1) is intentionally dropped: it is exactly cancelled by the
    # second InstanceNorm's mean subtraction.
    w1 = params["w1"].astype(mm_dtype)
    w2 = params["w2"].astype(mm_dtype)

    has_sc_conv = params.get("ws") is not None
    if has_sc_conv:
        ws = params["ws"].astype(mm_dtype)
        bias = (params["b2"] + params["bs"]).reshape(OC, 1).astype(jnp.float32)
    else:
        assert OC == C, "identity residual requires out_channels == channels"
        bias = params["b2"].reshape(OC, 1).astype(jnp.float32)

    def full(arr):  # whole-array (untiled, grid-invariant) operand
        shape = arr.shape
        return pl.BlockSpec(shape, lambda bb: (0,) * len(shape))

    operands = [xr, s1, t1, w1, s2, t2, w2, bias]
    in_specs = [pl.BlockSpec((1, C, Np), lambda bb: (bb, 0, 0))] \
        + [full(a) for a in operands[1:]]

    common = dict(inv_n=1.0 / N, pad_cnt=pad_cnt, n_valid=N,
                  mm_dtype=mm_dtype, tail_dtype=tail_dtype)
    if has_sc_conv:
        operands.append(ws)
        in_specs.append(full(ws))
        kernel = functools.partial(_kernel_shortcut, **common)
    else:
        kernel = functools.partial(_kernel_identity, **common)

    # VMEM budget: double-buffered x/out blocks + a generous allowance for the
    # in-kernel intermediates, capped generation-aware (no 96 MiB constant).
    io_b = jnp.dtype(io_dtype).itemsize
    mm_b = jnp.dtype(mm_dtype).itemsize
    mx = max(C, OC)
    est = (2 * C * Np * io_b            # double-buffered input block
           + 2 * OC * Np * io_b         # double-buffered output block
           + 8 * mx * Np * 4            # f32/bf16 intermediates (generous)
           + 2 * (OC * C + OC * OC + OC * C) * mm_b   # weights (2 buffers)
           + (2 << 20))                 # headroom for Mosaic internal scratch
    cap = int(0.8 * _vmem_cap_bytes())
    vmem_limit = int(min(max(est, 4 << 20), cap))

    out = pl.pallas_call(
        kernel,
        out_shape=jax.ShapeDtypeStruct((B, OC, Np), io_dtype),
        grid=(B,),
        in_specs=in_specs,
        out_specs=pl.BlockSpec((1, OC, Np), lambda bb: (bb, 0, 0)),
        compiler_params=pltpu.CompilerParams(
            dimension_semantics=("parallel",),
            vmem_limit_bytes=vmem_limit,
        ),
    )(*operands)

    if pad_cnt and keep_padded_output:
        return out                      # (B, OC, Np), padded, in io_dtype
    if pad_cnt:
        out = out[..., :N]
    return out.reshape(B, OC, H, W)


# --------------------------- pure-JAX reference ----------------------------- #
def pointcn_reference(x, params):
    def inorm(v):
        mu = v.mean(axis=(2, 3), keepdims=True)
        var = ((v - mu) ** 2).mean(axis=(2, 3), keepdims=True)
        return (v - mu) / jnp.sqrt(var + EPS_IN)

    def bn(v, g, b, rm, rv):
        s = g / jnp.sqrt(rv + EPS_BN)
        return v * s[None, :, None, None] + (b - rm * s)[None, :, None, None]

    def conv1x1(v, w, bias):
        return jnp.einsum('bchw,oc->bohw', v, w) + bias[None, :, None, None]

    h = jax.nn.relu(bn(inorm(x), params["bn1_gamma"], params["bn1_beta"],
                       params["bn1_rm"], params["bn1_rv"]))
    y = conv1x1(h, params["w1"], params["b1"])
    h2 = jax.nn.relu(bn(inorm(y), params["bn2_gamma"], params["bn2_beta"],
                        params["bn2_rm"], params["bn2_rv"]))
    out = conv1x1(h2, params["w2"], params["b2"])
    if params.get("ws") is not None:
        out = out + conv1x1(x, params["ws"], params["bs"])
    else:
        out = out + x
    return out


# ------------------------------ param init --------------------------------- #
def init_params(key, channels, out_channels):
    ks = jax.random.split(key, 12)
    p = {
        "bn1_gamma": jax.random.normal(ks[0], (channels,)) * 0.1 + 1.0,
        "bn1_beta":  jax.random.normal(ks[1], (channels,)) * 0.1,
        "bn1_rm":    jax.random.normal(ks[2], (channels,)) * 0.1,
        "bn1_rv":    jnp.abs(jax.random.normal(ks[3], (channels,))) * 0.1 + 0.9,
        "w1": jax.random.normal(ks[4], (out_channels, channels)) * 0.2,
        "b1": jax.random.normal(ks[5], (out_channels,)) * 0.1,
        "bn2_gamma": jax.random.normal(ks[6], (out_channels,)) * 0.1 + 1.0,
        "bn2_beta":  jax.random.normal(ks[7], (out_channels,)) * 0.1,
        "bn2_rm":    jax.random.normal(ks[8], (out_channels,)) * 0.1,
        "bn2_rv":    jnp.abs(jax.random.normal(ks[9], (out_channels,))) * 0.1 + 0.9,
        "w2": jax.random.normal(ks[10], (out_channels, out_channels)) * 0.2,
        "b2": jax.random.normal(ks[11], (out_channels,)) * 0.1,
    }
    if out_channels != channels:   # shot_cut 1x1 conv
        k_sc = jax.random.split(ks[0], 2)
        p["ws"] = jax.random.normal(k_sc[0], (out_channels, channels)) * 0.2
        p["bs"] = jax.random.normal(k_sc[1], (out_channels,)) * 0.1
    else:
        p["ws"] = None
        p["bs"] = None
    p = {k: (v.astype(jnp.float32) if v is not None else None) for k, v in p.items()}
    return p


if __name__ == "__main__":
    key = jax.random.PRNGKey(0)
    kx1, kp1, kx2, kp2 = jax.random.split(key, 4)

    # Case 1: out_channels != channels -> shot_cut conv path (B,C,H,W = 2,4,16,16).
    B, C, H, W, OC = 2, 4, 16, 16, 8
    x1 = jax.random.normal(kx1, (B, C, H, W), dtype=jnp.float32)
    p1 = init_params(kp1, C, OC)
    ref1 = pointcn_reference(x1, p1)

    out_f32 = jax.block_until_ready(pointcn_forward(x1, p1, use_bf16=False))
    assert out_f32.shape == (B, OC, H, W)
    assert jnp.allclose(out_f32, ref1, atol=1e-4, rtol=1e-4), \
        float(jnp.max(jnp.abs(out_f32 - ref1)))

    out_bf16 = jax.block_until_ready(pointcn_forward(x1, p1, use_bf16=True))
    out_bf16 = out_bf16.astype(jnp.float32)
    rel = float(jnp.max(jnp.abs(out_bf16 - ref1)) / (jnp.max(jnp.abs(ref1)) + 1e-6))
    assert rel < 5e-2, rel   # bf16 I/O + bf16 MXU + bf16 tail

    # Case 2: out_channels == channels -> identity residual (no shortcut matmul),
    # non-multiple-of-128 spatial size exercises padding + analytic stat fixups.
    B2, C2, H2, W2 = 2, 8, 10, 10
    x2 = jax.random.normal(kx2, (B2, C2, H2, W2), dtype=jnp.float32)
    p2 = init_params(kp2, C2, C2)
    ref2 = pointcn_reference(x2, p2)

    out2 = jax.block_until_ready(pointcn_forward(x2, p2, use_bf16=False))
    assert out2.shape == (B2, C2, H2, W2)
    assert jnp.allclose(out2, ref2, atol=1e-4, rtol=1e-4), \
        float(jnp.max(jnp.abs(out2 - ref2)))

    out2_bf16 = jax.block_until_ready(pointcn_forward(x2, p2, use_bf16=True))
    out2_bf16 = out2_bf16.astype(jnp.float32)
    rel2 = float(jnp.max(jnp.abs(out2_bf16 - ref2)) / (jnp.max(jnp.abs(ref2)) + 1e-6))
    assert rel2 < 5e-2, rel2

    print("KERNEL_OK")
</pallas_src>

<mosaic_0001>
module attributes {stable_mosaic.version = 11 : i64} {
  func.func @_kernel_shortcut(%arg0: i32, %arg1: memref<1x4x256xf32, #tpu.memory_space<vmem>>, %arg2: memref<4x1xf32, #tpu.memory_space<vmem>>, %arg3: memref<4x1xf32, #tpu.memory_space<vmem>>, %arg4: memref<8x4xf32, #tpu.memory_space<vmem>>, %arg5: memref<8x1xf32, #tpu.memory_space<vmem>>, %arg6: memref<8x1xf32, #tpu.memory_space<vmem>>, %arg7: memref<8x8xf32, #tpu.memory_space<vmem>>, %arg8: memref<8x1xf32, #tpu.memory_space<vmem>>, %arg9: memref<8x4xf32, #tpu.memory_space<vmem>>, %arg10: memref<1x8x256xf32, #tpu.memory_space<vmem>>) attributes {dimension_semantics = [#tpu.dimension_semantics<parallel>], iteration_bounds = array<i64: 2>, scalar_prefetch = 0 : i64, scratch_operands = 0 : i64, tpu.core_type = #tpu.core_type<tc>, window_params = [{transform_indices = @transform_0, window_bounds = array<i64: 1, 4, 256>}, {pipeline_mode = #tpu.pipeline_mode<synchronous>, transform_indices = @transform_1, window_bounds = array<i64: 4, 1>}, {pipeline_mode = #tpu.pipeline_mode<synchronous>, transform_indices = @transform_2, window_bounds = array<i64: 4, 1>}, {pipeline_mode = #tpu.pipeline_mode<synchronous>, transform_indices = @transform_3, window_bounds = array<i64: 8, 4>}, {pipeline_mode = #tpu.pipeline_mode<synchronous>, transform_indices = @transform_4, window_bounds = array<i64: 8, 1>}, {pipeline_mode = #tpu.pipeline_mode<synchronous>, transform_indices = @transform_5, window_bounds = array<i64: 8, 1>}, {pipeline_mode = #tpu.pipeline_mode<synchronous>, transform_indices = @transform_6, window_bounds = array<i64: 8, 8>}, {pipeline_mode = #tpu.pipeline_mode<synchronous>, transform_indices = @transform_7, window_bounds = array<i64: 8, 1>}, {pipeline_mode = #tpu.pipeline_mode<synchronous>, transform_indices = @transform_8, window_bounds = array<i64: 8, 4>}, {transform_indices = @transform_9, window_bounds = array<i64: 1, 8, 256>}]} {
    %c0 = arith.constant 0 : index
    %c0_0 = arith.constant 0 : index
    %c0_1 = arith.constant 0 : index
    %0 = vector.load %arg1[%c0, %c0_0, %c0_1] : memref<1x4x256xf32, #tpu.memory_space<vmem>>, vector<1x4x256xf32>
    %1 = vector.shape_cast %0 : vector<1x4x256xf32> to vector<4x256xf32>
    %c0_2 = arith.constant 0 : index
    %c0_3 = arith.constant 0 : index
    %2 = vector.load %arg2[%c0_2, %c0_3] : memref<4x1xf32, #tpu.memory_space<vmem>>, vector<4x1xf32>
    %c0_4 = arith.constant 0 : index
    %c0_5 = arith.constant 0 : index
    %3 = vector.load %arg3[%c0_4, %c0_5] : memref<4x1xf32, #tpu.memory_space<vmem>>, vector<4x1xf32>
    %c0_6 = arith.constant 0 : index
    %c0_7 = arith.constant 0 : index
    %4 = vector.load %arg4[%c0_6, %c0_7] : memref<8x4xf32, #tpu.memory_space<vmem>>, vector<8x4xf32>
    %c0_8 = arith.constant 0 : index
    %c0_9 = arith.constant 0 : index
    %5 = vector.load %arg5[%c0_8, %c0_9] : memref<8x1xf32, #tpu.memory_space<vmem>>, vector<8x1xf32>
    %c0_10 = arith.constant 0 : index
    %c0_11 = arith.constant 0 : index
    %6 = vector.load %arg6[%c0_10, %c0_11] : memref<8x1xf32, #tpu.memory_space<vmem>>, vector<8x1xf32>
    %c0_12 = arith.constant 0 : index
    %c0_13 = arith.constant 0 : index
    %7 = vector.load %arg7[%c0_12, %c0_13] : memref<8x8xf32, #tpu.memory_space<vmem>>, vector<8x8xf32>
    %cst = arith.constant dense<0.000000e+00> : vector<4xf32>
    %8 = vector.multi_reduction <add>, %1, %cst [1] : vector<4x256xf32> to vector<4xf32>
    %9 = vector.shape_cast %8 : vector<4xf32> to vector<4x1xf32>
    %cst_14 = arith.constant 3.906250e-03 : f32
    %10 = vector.broadcast %cst_14 : f32 to vector<4x1xf32>
    %11 = arith.mulf %9, %10 : vector<4x1xf32>
    %12 = vector.broadcast %11 : vector<4x1xf32> to vector<4x256xf32>
    %13 = arith.subf %1, %12 : vector<4x256xf32>
    %14 = arith.mulf %13, %13 : vector<4x256xf32>
    %cst_15 = arith.constant dense<0.000000e+00> : vector<4xf32>
    %15 = vector.multi_reduction <add>, %14, %cst_15 [1] : vector<4x256xf32> to vector<4xf32>
    %16 = vector.shape_cast %15 : vector<4xf32> to vector<4x1xf32>
    %cst_16 = arith.constant 3.906250e-03 : f32
    %17 = vector.broadcast %cst_16 : f32 to vector<4x1xf32>
    %18 = arith.mulf %16, %17 : vector<4x1xf32>
    %cst_17 = arith.constant 1.000000e-03 : f32
    %19 = vector.broadcast %cst_17 : f32 to vector<4x1xf32>
    %20 = arith.addf %18, %19 : vector<4x1xf32>
    %21 = math.rsqrt %20 : vector<4x1xf32>
    %22 = arith.mulf %2, %21 : vector<4x1xf32>
    %23 = arith.mulf %11, %22 : vector<4x1xf32>
    %24 = arith.subf %3, %23 : vector<4x1xf32>
    %25 = vector.broadcast %22 : vector<4x1xf32> to vector<4x256xf32>
    %26 = arith.mulf %1, %25 : vector<4x256xf32>
    %27 = vector.broadcast %24 : vector<4x1xf32> to vector<4x256xf32>
    %28 = arith.addf %26, %27 : vector<4x256xf32>
    %cst_18 = arith.constant 0.000000e+00 : f32
    %29 = vector.broadcast %cst_18 : f32 to vector<4x256xf32>
    %30 = arith.maximumf %28, %29 : vector<4x256xf32>
    %cst_19 = arith.constant dense<0.000000e+00> : vector<8x256xf32>
    %31 = tpu.matmul %4, %30, %cst_19 {dimension_numbers = #tpu.dot_dimension_numbers<[1], [0], [0], [1], [0, 0, 1, 1], [], []>} : vector<8x4xf32>, vector<4x256xf32>, vector<8x256xf32> -> vector<8x256xf32>
    %cst_20 = arith.constant dense<0.000000e+00> : vector<8xf32>
    %32 = vector.multi_reduction <add>, %31, %cst_20 [1] : vector<8x256xf32> to vector<8xf32>
    %33 = vector.shape_cast %32 : vector<8xf32> to vector<8x1xf32>
    %cst_21 = arith.constant 3.906250e-03 : f32
    %34 = vector.broadcast %cst_21 : f32 to vector<8x1xf32>
    %35 = arith.mulf %33, %34 : vector<8x1xf32>
    %36 = vector.broadcast %35 : vector<8x1xf32> to vector<8x256xf32>
    %37 = arith.subf %31, %36 : vector<8x256xf32>
    %38 = arith.mulf %37, %37 : vector<8x256xf32>
    %cst_22 = arith.constant dense<0.000000e+00> : vector<8xf32>
    %39 = vector.multi_reduction <add>, %38, %cst_22 [1] : vector<8x256xf32> to vector<8xf32>
    %40 = vector.shape_cast %39 : vector<8xf32> to vector<8x1xf32>
    %cst_23 = arith.constant 3.906250e-03 : f32
    %41 = vector.broadcast %cst_23 : f32 to vector<8x1xf32>
    %42 = arith.mulf %40, %41 : vector<8x1xf32>
    %cst_24 = arith.constant 1.000000e-03 : f32
    %43 = vector.broadcast %cst_24 : f32 to vector<8x1xf32>
    %44 = arith.addf %42, %43 : vector<8x1xf32>
    %45 = math.rsqrt %44 : vector<8x1xf32>
    %46 = arith.mulf %5, %45 : vector<8x1xf32>
    %47 = arith.mulf %35, %46 : vector<8x1xf32>
    %48 = arith.subf %6, %47 : vector<8x1xf32>
    %49 = vector.broadcast %46 : vector<8x1xf32> to vector<8x256xf32>
    %50 = arith.mulf %31, %49 : vector<8x256xf32>
    %51 = vector.broadcast %48 : vector<8x1xf32> to vector<8x256xf32>
    %52 = arith.addf %50, %51 : vector<8x256xf32>
    %cst_25 = arith.constant 0.000000e+00 : f32
    %53 = vector.broadcast %cst_25 : f32 to vector<8x256xf32>
    %54 = arith.maximumf %52, %53 : vector<8x256xf32>
    %cst_26 = arith.constant dense<0.000000e+00> : vector<8x256xf32>
    %55 = tpu.matmul %7, %54, %cst_26 {dimension_numbers = #tpu.dot_dimension_numbers<[1], [0], [0], [1], [0, 0, 1, 1], [], []>} : vector<8x8xf32>, vector<8x256xf32>, vector<8x256xf32> -> vector<8x256xf32>
    %c0_27 = arith.constant 0 : index
    %c0_28 = arith.constant 0 : index
    %56 = vector.load %arg9[%c0_27, %c0_28] : memref<8x4xf32, #tpu.memory_space<vmem>>, vector<8x4xf32>
    %cst_29 = arith.constant dense<0.000000e+00> : vector<8x256xf32>
    %57 = tpu.matmul %56, %1, %cst_29 {dimension_numbers = #tpu.dot_dimension_numbers<[1], [0], [0], [1], [0, 0, 1, 1], [], []>} : vector<8x4xf32>, vector<4x256xf32>, vector<8x256xf32> -> vector<8x256xf32>
    %58 = arith.addf %57, %55 : vector<8x256xf32>
    %c0_30 = arith.constant 0 : index
    %c0_31 = arith.constant 0 : index
    %59 = vector.load %arg8[%c0_30, %c0_31] : memref<8x1xf32, #tpu.memory_space<vmem>>, vector<8x1xf32>
    %60 = vector.broadcast %59 : vector<8x1xf32> to vector<8x256xf32>
    %61 = arith.addf %58, %60 : vector<8x256xf32>
    %c0_32 = arith.constant 0 : index
    %c0_33 = arith.constant 0 : index
    %c0_34 = arith.constant 0 : index
    %62 = vector.load %arg10[%c0_32, %c0_33, %c0_34] : memref<1x8x256xf32, #tpu.memory_space<vmem>>, vector<1x8x256xf32>
    %63 = vector.shape_cast %62 : vector<1x8x256xf32> to vector<8x256xf32>
    %64 = vector.shape_cast %61 : vector<8x256xf32> to vector<1x8x256xf32>
    tpu.vector_store %arg10[%c0_32, %c0_33, %c0_34], %64 {strides = array<i32>} : memref<1x8x256xf32, #tpu.memory_space<vmem>>, vector<1x8x256xf32>,
    return
  }
  func.func @transform_0(%arg0: i32) -> (i32, i32, i32) {
    %c0_i32 = arith.constant 0 : i32
    %c0_i32_0 = arith.constant 0 : i32
    %c0_i32_1 = arith.constant 0 : i32
    return %arg0, %c0_i32, %c0_i32_0 : i32, i32, i32
  }
  func.func @transform_1(%arg0: i32) -> (i32, i32) {
    %c0_i32 = arith.constant 0 : i32
    %c0_i32_0 = arith.constant 0 : i32
    %c0_i32_1 = arith.constant 0 : i32
    return %c0_i32, %c0_i32_0 : i32, i32
  }
  func.func @transform_2(%arg0: i32) -> (i32, i32) {
    %c0_i32 = arith.constant 0 : i32
    %c0_i32_0 = arith.constant 0 : i32
    %c0_i32_1 = arith.constant 0 : i32
    return %c0_i32, %c0_i32_0 : i32, i32
  }
  func.func @transform_3(%arg0: i32) -> (i32, i32) {
    %c0_i32 = arith.constant 0 : i32
    %c0_i32_0 = arith.constant 0 : i32
    %c0_i32_1 = arith.constant 0 : i32
    return %c0_i32, %c0_i32_0 : i32, i32
  }
  func.func @transform_4(%arg0: i32) -> (i32, i32) {
    %c0_i32 = arith.constant 0 : i32
    %c0_i32_0 = arith.constant 0 : i32
    %c0_i32_1 = arith.constant 0 : i32
    return %c0_i32, %c0_i32_0 : i32, i32
  }
  func.func @transform_5(%arg0: i32) -> (i32, i32) {
    %c0_i32 = arith.constant 0 : i32
    %c0_i32_0 = arith.constant 0 : i32
    %c0_i32_1 = arith.constant 0 : i32
    return %c0_i32, %c0_i32_0 : i32, i32
  }
  func.func @transform_6(%arg0: i32) -> (i32, i32) {
    %c0_i32 = arith.constant 0 : i32
    %c0_i32_0 = arith.constant 0 : i32
    %c0_i32_1 = arith.constant 0 : i32
    return %c0_i32, %c0_i32_0 : i32, i32
  }
  func.func @transform_7(%arg0: i32) -> (i32, i32) {
    %c0_i32 = arith.constant 0 : i32
    %c0_i32_0 = arith.constant 0 : i32
    %c0_i32_1 = arith.constant 0 : i32
    return %c0_i32, %c0_i32_0 : i32, i32
  }
  func.func @transform_8(%arg0: i32) -> (i32, i32) {
    %c0_i32 = arith.constant 0 : i32
    %c0_i32_0 = arith.constant 0 : i32
    %c0_i32_1 = arith.constant 0 : i32
    return %c0_i32, %c0_i32_0 : i32, i32
  }
  func.func @transform_9(%arg0: i32) -> (i32, i32, i32) {
    %c0_i32 = arith.constant 0 : i32
    %c0_i32_0 = arith.constant 0 : i32
    %c0_i32_1 = arith.constant 0 : i32
    return %arg0, %c0_i32, %c0_i32_0 : i32, i32, i32
  }
}

</mosaic_0001>

<llo_original>
// kernel: tpu_custom_call.1
$region0: #{tpu_custom_call.1}
  #allocation0 [shape = 'u32[]', space=smem, size = 0x4, offset = 0x4, fixed_abs, tag = 'smem constant byte address 0x4 - core index']
  #allocation1 [shape = 'u32[144,128]{1,0:T(1,128)}', space=vmem, size = 0x12000, scoped, tag = 'internal scratch']
  %s0 = inlined_call_operand.vmem [shape: f32[2,4,256], index: 0, kind: input, shape index: {}]
  %s1 = inlined_call_operand.vmem [shape: f32[4,1], index: 1, kind: input, shape index: {}]
  %s2 = inlined_call_operand.vmem [shape: f32[4,1], index: 2, kind: input, shape index: {}]
  %s3 = inlined_call_operand.vmem [shape: f32[8,4], index: 3, kind: input, shape index: {}]
  %s4 = inlined_call_operand.vmem [shape: f32[8,1], index: 4, kind: input, shape index: {}]
  %s5 = inlined_call_operand.vmem [shape: f32[8,1], index: 5, kind: input, shape index: {}]
  %s6 = inlined_call_operand.vmem [shape: f32[8,8], index: 6, kind: input, shape index: {}]
  %s7 = inlined_call_operand.vmem [shape: f32[8,1], index: 7, kind: input, shape index: {}]
  %s8 = inlined_call_operand.vmem [shape: f32[8,4], index: 8, kind: input, shape index: {}]
  %s9 = inlined_call_operand.hbm [shape: f32[2,8,256], index: 9, kind: output, shape index: {}]
  %s10 = sld [smem:[#allocation0]]
  $region69: #{tpu_custom_call.1} parent=0
    _
  %s12 = ssub.s32 1, %s10
  %s13 = scalar_select 0, %s12, %s10
  $region1: #{tpu_custom_call.1} parent=0
    #allocation2 [shape = 'u8[16384]{0}', space=vmem, size = 0x4000, scoped, tag = 'output window, operand 0']
    #allocation3 [shape = 's32[2]{0}', space=sflag, size = 0x8, scoped, tag = 'scoped memory for tpu_custom_call.1']
    %14 = vsyncpa [#allocation3], 0
    %s15 = scalar_lea.sflag [#allocation3], 1
    %16 = vsyncpa %s15, 0
    loop: start=0, step=1, limit=4
    $region2: #{tpu_custom_call.1} parent=1 // loop_pre_header
      _
    $region3: #{tpu_custom_call.1} parent=1 // loop_header
      %s18 = sphi 0, %s22
      %p19 = scmp.ge.s32.totalorder %s18, 4
      %s28 = sphi 0, %s30
      %s31 = sphi 0, %s28
      %s32 = sphi 0, %s31
      %s48 = sphi 0, %s32
      %s52 = sphi 0, %s52
      %s54 = sphi 0, %s52
      %s55 = sphi 0, %s54
      %s69 = sphi 0, %s55
      %s73 = sphi 0, %s73
      %s75 = sphi 0, %s73
      %s76 = sphi 0, %s75
      %s90 = sphi 0, %s76
      %s94 = sphi 0, %s94
      %s96 = sphi 0, %s94
      %s97 = sphi 0, %s96
      %s111 = sphi 0, %s97
      %s115 = sphi 0, %s115
      %s117 = sphi 0, %s115
      %s118 = sphi 0, %s117
      %s132 = sphi 0, %s118
      %s136 = sphi 0, %s136
      %s138 = sphi 0, %s136
      %s139 = sphi 0, %s138
      %s153 = sphi 0, %s139
      %s157 = sphi 0, %s157
      %s159 = sphi 0, %s157
      %s160 = sphi 0, %s159
      %s174 = sphi 0, %s160
      %s178 = sphi 0, %s178
      %s180 = sphi 0, %s178
      %s181 = sphi 0, %s180
      %s195 = sphi 0, %s181
      %s199 = sphi 0, %s199
      %s201 = sphi 0, %s199
      %s202 = sphi 0, %s201
      %s216 = sphi 0, %s202
      %s222 = sphi 0, %s224
      %s225 = sphi 0, %s222
      %s226 = sphi 0, %s225
      %s242 = sphi 0, %s226
    $region4: #{tpu_custom_call.1} parent=1 // loop_header_branch
      %21 = sbr.rel (%p19) target = $region8
    $region5: #{tpu_custom_call.1} parent=1 // loop_body
      %s23 = ssub.s32 %s18, 1
      %s24 = ssub.s32 %s18, 2
      %s25 = sadd.s32 %s18, 1
      %s26 = ssub.s32 %s18, %s25
      %p27 = scmp.eq.s32.totalorder %s26, 0
      %s29 = sadd.s32 %s28, 1
      %s30 = scalar_select %p27, %s28, %s29
      %p33 = pneg %p27
      %p34 = scmp.eq.s32.totalorder %s18, 1
      %p35 = por %p33, %p34
      %p36 = scmp.ne.s32.totalorder %s28, %s31
      %p37 = scmp.eq.s32.totalorder %s18, 0
      %p38 = por %p36, %p37
      %p39 = scmp.ne.s32.totalorder %s28, %s31
      %p40 = scmp.eq.s32.totalorder %s23, 1
      %p41 = por %p39, %p40
      %p42 = scmp.ne.s32.totalorder %s31, %s32
      %p43 = scmp.eq.s32.totalorder %s23, 0
      %p44 = por %p42, %p43
      %p45 = scmp.ne.s32.totalorder %s31, %s32
      %p46 = scmp.eq.s32.totalorder %s24, 1
      %p47 = por %p45, %p46
      %p49 = scmp.ne.s32.totalorder %s32, %s48
      %p50 = scmp.eq.s32.totalorder %s24, 0
      %p51 = por %p49, %p50
      %s53 = sadd.s32 %s52, 1
      %p56 = scmp.eq.s32.totalorder %s18, 1
      %p57 = scmp.ne.s32.totalorder %s52, %s54
      %p58 = scmp.eq.s32.totalorder %s18, 0
      %p59 = por %p57, %p58
      %p60 = scmp.ne.s32.totalorder %s52, %s54
      %p61 = scmp.eq.s32.totalorder %s23, 1
      %p62 = por %p60, %p61
      %p63 = scmp.ne.s32.totalorder %s54, %s55
      %p64 = scmp.eq.s32.totalorder %s23, 0
      %p65 = por %p63, %p64
      %p66 = scmp.ne.s32.totalorder %s54, %s55
      %p67 = scmp.eq.s32.totalorder %s24, 1
      %p68 = por %p66, %p67
      %p70 = scmp.ne.s32.totalorder %s55, %s69
      %p71 = scmp.eq.s32.totalorder %s24, 0
      %p72 = por %p70, %p71
      %s74 = sadd.s32 %s73, 1
      %p77 = scmp.eq.s32.totalorder %s18, 1
      %p78 = scmp.ne.s32.totalorder %s73, %s75
      %p79 = scmp.eq.s32.totalorder %s18, 0
      %p80 = por %p78, %p79
      %p81 = scmp.ne.s32.totalorder %s73, %s75
      %p82 = scmp.eq.s32.totalorder %s23, 1
      %p83 = por %p81, %p82
      %p84 = scmp.ne.s32.totalorder %s75, %s76
      %p85 = scmp.eq.s32.totalorder %s23, 0
      %p86 = por %p84, %p85
      %p87 = scmp.ne.s32.totalorder %s75, %s76
      %p88 = scmp.eq.s32.totalorder %s24, 1
      %p89 = por %p87, %p88
      %p91 = scmp.ne.s32.totalorder %s76, %s90
      %p92 = scmp.eq.s32.totalorder %s24, 0
      %p93 = por %p91, %p92
      %s95 = sadd.s32 %s94, 1
      %p98 = scmp.eq.s32.totalorder %s18, 1
      %p99 = scmp.ne.s32.totalorder %s94, %s96
      %p100 = scmp.eq.s32.totalorder %s18, 0
      %p101 = por %p99, %p100
      %p102 = scmp.ne.s32.totalorder %s94, %s96
      %p103 = scmp.eq.s32.totalorder %s23, 1
      %p104 = por %p102, %p103
      %p105 = scmp.ne.s32.totalorder %s96, %s97
      %p106 = scmp.eq.s32.totalorder %s23, 0
      %p107 = por %p105, %p106
      %p108 = scmp.ne.s32.totalorder %s96, %s97
      %p109 = scmp.eq.s32.totalorder %s24, 1
      %p110 = por %p108, %p109
      %p112 = scmp.ne.s32.totalorder %s97, %s111
      %p113 = scmp.eq.s32.totalorder %s24, 0
      %p114 = por %p112, %p113
      %s116 = sadd.s32 %s115, 1
      %p119 = scmp.eq.s32.totalorder %s18, 1
      %p120 = scmp.ne.s32.totalorder %s115, %s117
      %p121 = scmp.eq.s32.totalorder %s18, 0
      %p122 = por %p120, %p121
      %p123 = scmp.ne.s32.totalorder %s115, %s117
      %p124 = scmp.eq.s32.totalorder %s23, 1
      %p125 = por %p123, %p124
      %p126 = scmp.ne.s32.totalorder %s117, %s118
      %p127 = scmp.eq.s32.totalorder %s23, 0
      %p128 = por %p126, %p127
      %p129 = scmp.ne.s32.totalorder %s117, %s118
      %p130 = scmp.eq.s32.totalorder %s24, 1
      %p131 = por %p129, %p130
      %p133 = scmp.ne.s32.totalorder %s118, %s132
      %p134 = scmp.eq.s32.totalorder %s24, 0
      %p135 = por %p133, %p134
      %s137 = sadd.s32 %s136, 1
      %p140 = scmp.eq.s32.totalorder %s18, 1
      %p141 = scmp.ne.s32.totalorder %s136, %s138
      %p142 = scmp.eq.s32.totalorder %s18, 0
      %p143 = por %p141, %p142
      %p144 = scmp.ne.s32.totalorder %s136, %s138
      %p145 = scmp.eq.s32.totalorder %s23, 1
      %p146 = por %p144, %p145
      %p147 = scmp.ne.s32.totalorder %s138, %s139
      %p148 = scmp.eq.s32.totalorder %s23, 0
      %p149 = por %p147, %p148
      %p150 = scmp.ne.s32.totalorder %s138, %s139
      %p151 = scmp.eq.s32.totalorder %s24, 1
      %p152 = por %p150, %p151
      %p154 = scmp.ne.s32.totalorder %s139, %s153
      %p155 = scmp.eq.s32.totalorder %s24, 0
      %p156 = por %p154, %p155
      %s158 = sadd.s32 %s157, 1
      %p161 = scmp.eq.s32.totalorder %s18, 1
      %p162 = scmp.ne.s32.totalorder %s157, %s159
      %p163 = scmp.eq.s32.totalorder %s18, 0
      %p164 = por %p162, %p163
      %p165 = scmp.ne.s32.totalorder %s157, %s159
      %p166 = scmp.eq.s32.totalorder %s23, 1
      %p167 = por %p165, %p166
      %p168 = scmp.ne.s32.totalorder %s159, %s160
      %p169 = scmp.eq.s32.totalorder %s23, 0
      %p170 = por %p168, %p169
      %p171 = scmp.ne.s32.totalorder %s159, %s160
      %p172 = scmp.eq.s32.totalorder %s24, 1
      %p173 = por %p171, %p172
      %p175 = scmp.ne.s32.totalorder %s160, %s174
      %p176 = scmp.eq.s32.totalorder %s24, 0
      %p177 = por %p175, %p176
      %s179 = sadd.s32 %s178, 1
      %p182 = scmp.eq.s32.totalorder %s18, 1
      %p183 = scmp.ne.s32.totalorder %s178, %s180
      %p184 = scmp.eq.s32.totalorder %s18, 0
      %p185 = por %p183, %p184
      %p186 = scmp.ne.s32.totalorder %s178, %s180
      %p187 = scmp.eq.s32.totalorder %s23, 1
      %p188 = por %p186, %p187
      %p189 = scmp.ne.s32.totalorder %s180, %s181
      %p190 = scmp.eq.s32.totalorder %s23, 0
      %p191 = por %p189, %p190
      %p192 = scmp.ne.s32.totalorder %s180, %s181
      %p193 = scmp.eq.s32.totalorder %s24, 1
      %p194 = por %p192, %p193
      %p196 = scmp.ne.s32.totalorder %s181, %s195
      %p197 = scmp.eq.s32.totalorder %s24, 0
      %p198 = por %p196, %p197
      %s200 = sadd.s32 %s199, 1
      %p203 = scmp.eq.s32.totalorder %s18, 1
      %p204 = scmp.ne.s32.totalorder %s199, %s201
      %p205 = scmp.eq.s32.totalorder %s18, 0
      %p206 = por %p204, %p205
      %p207 = scmp.ne.s32.totalorder %s199, %s201
      %p208 = scmp.eq.s32.totalorder %s23, 1
      %p209 = por %p207, %p208
      %p210 = scmp.ne.s32.totalorder %s201, %s202
      %p211 = scmp.eq.s32.totalorder %s23, 0
      %p212 = por %p210, %p211
      %p213 = scmp.ne.s32.totalorder %s201, %s202
      %p214 = scmp.eq.s32.totalorder %s24, 1
      %p215 = por %p213, %p214
      %p217 = scmp.ne.s32.totalorder %s202, %s216
      %p218 = scmp.eq.s32.totalorder %s24, 0
      %p219 = por %p217, %p218
      %s220 = ssub.s32 %s18, %s25
      %p221 = scmp.eq.s32.totalorder %s220, 0
      %s223 = sadd.s32 %s222, 1
      %s224 = scalar_select %p221, %s222, %s223
      %p227 = pneg %p221
      %p228 = scmp.eq.s32.totalorder %s18, 1
      %p229 = por %p227, %p228
      %p230 = scmp.ne.s32.totalorder %s222, %s225
      %p231 = scmp.eq.s32.totalorder %s18, 0
      %p232 = por %p230, %p231
      %p233 = scmp.ne.s32.totalorder %s222, %s225
      %p234 = scmp.eq.s32.totalorder %s23, 1
      %p235 = por %p233, %p234
      %p236 = scmp.ne.s32.totalorder %s225, %s226
      %p237 = scmp.eq.s32.totalorder %s23, 0
      %p238 = por %p236, %p237
      %p239 = scmp.ne.s32.totalorder %s225, %s226
      %p240 = scmp.eq.s32.totalorder %s24, 1
      %p241 = por %p239, %p240
      %p243 = scmp.ne.s32.totalorder %s226, %s242
      %p244 = scmp.eq.s32.totalorder %s24, 0
      %p245 = por %p243, %p244
      %p246 = scmp.le.s32.totalorder 1, %s18
      %p247 = scmp.lt.s32.totalorder %s18, 3
      %p248 = pnand %p246, %p247
      %p249 = pneg %p248
      // Predicated region
      $region9: #{tpu_custom_call.1} parent=5 // pred_check
        _
      $region10: #{tpu_custom_call.1} parent=5 // pred_check_branch
        %251 = sbr.rel (%p248) target = $region12
      $region11: #{tpu_custom_call.1} parent=5 // pred_region
        %s252 = ssub.s32 %s18, 1
        // Predicated region
        $region13: #{tpu_custom_call.1} parent=11 // pred_check
          %p253 = pneg %p65
        $region14: #{tpu_custom_call.1} parent=11 // pred_check_branch
          %255 = sbr.rel (%p253) target = $region16
        $region15: #{tpu_custom_call.1} parent=11 // pred_region
          _
        $region16: #{tpu_custom_call.1} parent=11 // pred_fallthru
          _
        // Predicated region
        $region17: #{tpu_custom_call.1} parent=11 // pred_check
          %p256 = pneg %p86
        $region18: #{tpu_custom_call.1} parent=11 // pred_check_branch
          %258 = sbr.rel (%p256) target = $region20
        $region19: #{tpu_custom_call.1} parent=11 // pred_region
          _
        $region20: #{tpu_custom_call.1} parent=11 // pred_fallthru
          _
        // Predicated region
        $region21: #{tpu_custom_call.1} parent=11 // pred_check
          %p259 = pneg %p107
        $region22: #{tpu_custom_call.1} parent=11 // pred_check_branch
          %261 = sbr.rel (%p259) target = $region24
        $region23: #{tpu_custom_call.1} parent=11 // pred_region
          _
        $region24: #{tpu_custom_call.1} parent=11 // pred_fallthru
          _
        // Predicated region
        $region25: #{tpu_custom_call.1} parent=11 // pred_check
          %p262 = pneg %p128
        $region26: #{tpu_custom_call.1} parent=11 // pred_check_branch
          %264 = sbr.rel (%p262) target = $region28
        $region27: #{tpu_custom_call.1} parent=11 // pred_region
          _
        $region28: #{tpu_custom_call.1} parent=11 // pred_fallthru
          _
        // Predicated region
        $region29: #{tpu_custom_call.1} parent=11 // pred_check
          %p265 = pneg %p149
        $region30: #{tpu_custom_call.1} parent=11 // pred_check_branch
          %267 = sbr.rel (%p265) target = $region32
        $region31: #{tpu_custom_call.1} parent=11 // pred_region
          _
        $region32: #{tpu_custom_call.1} parent=11 // pred_fallthru
          _
        // Predicated region
        $region33: #{tpu_custom_call.1} parent=11 // pred_check
          %p268 = pneg %p170
        $region34: #{tpu_custom_call.1} parent=11 // pred_check_branch
          %270 = sbr.rel (%p268) target = $region36
        $region35: #{tpu_custom_call.1} parent=11 // pred_region
          _
        $region36: #{tpu_custom_call.1} parent=11 // pred_fallthru
          _
        // Predicated region
        $region37: #{tpu_custom_call.1} parent=11 // pred_check
          %p271 = pneg %p191
        $region38: #{tpu_custom_call.1} parent=11 // pred_check_branch
          %273 = sbr.rel (%p271) target = $region40
        $region39: #{tpu_custom_call.1} parent=11 // pred_region
          _
        $region40: #{tpu_custom_call.1} parent=11 // pred_fallthru
          _
        // Predicated region
        $region41: #{tpu_custom_call.1} parent=11 // pred_check
          %p274 = pneg %p212
        $region42: #{tpu_custom_call.1} parent=11 // pred_check_branch
          %276 = sbr.rel (%p274) target = $region44
        $region43: #{tpu_custom_call.1} parent=11 // pred_region
          _
        $region44: #{tpu_custom_call.1} parent=11 // pred_fallthru
          _
      $region12: #{tpu_custom_call.1} parent=5 // pred_fallthru
        _
      %p277 = scmp.lt.s32.totalorder %s18, 2
      // Predicated region
      $region45: #{tpu_custom_call.1} parent=5 // pred_check
        %p278 = pneg %p277
      $region46: #{tpu_custom_call.1} parent=5 // pred_check_branch
        %280 = sbr.rel (%p278) target = $region48
      $region47: #{tpu_custom_call.1} parent=5 // pred_region
        // Predicated region
        $region49: #{tpu_custom_call.1} parent=47 // pred_check
          %p281 = pneg %p38
        $region50: #{tpu_custom_call.1} parent=47 // pred_check_branch
          %283 = sbr.rel (%p281) target = $region52
        $region51: #{tpu_custom_call.1} parent=47 // pred_region
          %p284 = scmp.lt.s32.totalorder %s18, 1
          %s285 = scalar_select %p284, %s18, 1
          %s286 = smul.addr %s285, 2
          %s287 = smul.addr %s286, 4
          %s288 = scalar_lea.vmem %s0, %s287
        $region52: #{tpu_custom_call.1} parent=47 // pred_fallthru
          _
      $region48: #{tpu_custom_call.1} parent=5 // pred_fallthru
        _
      %p289 = scmp.le.s32.totalorder 1, %s18
      %p290 = scmp.lt.s32.totalorder %s18, 3
      %p291 = pnand %p289, %p290
      %p292 = pneg %p291
      // Predicated region
      $region53: #{tpu_custom_call.1} parent=5 // pred_check
        _
      $region54: #{tpu_custom_call.1} parent=5 // pred_check_branch
        %294 = sbr.rel (%p291) target = $region56
      $region55: #{tpu_custom_call.1} parent=5 // pred_region
        %s295 = ssub.s32 %s18, 1
        %p296 = scmp.lt.s32.totalorder %s23, 1
        %s297 = scalar_select %p296, %s23, 1
        %s298 = smul.addr %s297, 2
        %s299 = smul.addr %s298, 4
        %s300 = scalar_lea.vmem %s0, %s299
        %p301 = pneg %p44
        %p302 = pneg %p41
        %p303 = pneg %p65
        %p304 = pneg %p62
        %p305 = pneg %p86
        %p306 = pneg %p83
        %p307 = pneg %p107
        %p308 = pneg %p104
        %p309 = pneg %p128
        %p310 = pneg %p125
        %p311 = pneg %p149
        %p312 = pneg %p146
        %p313 = pneg %p170
        %p314 = pneg %p167
        %p315 = pneg %p191
        %p316 = pneg %p188
        %p317 = pneg %p212
        %p318 = pneg %p209
        %p319 = pneg %p238
        %p320 = pneg %p235
        %s321 = sand.u32 %s225, 1
        %s322 = scalar_lea.sflag [#allocation3], %s321
        %s323 = sand.u32 %s225, 1
        %s324 = smul.addr %s323, 16
        %s325 = scalar_lea.vmem [#allocation2], %s324
        %p326 = scmp.lt.s32.totalorder %s23, 1
        %s327 = scalar_select %p326, %s23, 1
        %s328 = smul.addr %s327, 2
        %s329 = smul.addr %s328, 4
        %s330 = scalar_lea.vmem %s0, %s329
        %v331 = vld [vmem:[%s330] sm:$0xff]
        %v332 = vld [vmem:[%s1] sm:$0xf]
        %v333 = vld [vmem:[%s2] sm:$0xf]
        %v334 = vld [vmem:[%s3] sm:$0xff]
        %v335 = vld [vmem:[%s4] sm:$0xff]
        %v336 = vld [vmem:[%s5] sm:$0xff]
        %v337 = vld [vmem:[%s6] sm:$0xff]
        %v339 = vcombine.high %v331, %v331
        %vm341 = vcmask 1043456
        %v342 = vsel %vm341, %v331, 0.0
        %v343 = vsel %vm341, %v339, 0.0
        %v344 = vadd.f32 %v342, %v343
        %345 = vadd.xlane.f32.xlu0 %v344
        %v346 = vpop.xlane.xlu0 %345
        %v347 = vmul.f32 %v346, 0.00390625
        %v350 = vunpack.c.l.s4 839922192
        %v351 = vunpack.c.0.s8 %v350
        %v352 = vlaneseq
        %v353 = vshrl.u32 %v352, 7
        %v354 = vsub.s32 %v351, %v353
        %v355 = vrot.slane %v347, %v354
        %v357 = vsub.f32 %v331, %v355
        %v358 = vmul.f32 %v357, %v357
        %v360 = vcombine.high %v358, %v358
        %v362 = vsel %vm341, %v358, 0.0
        %v363 = vsel %vm341, %v360, 0.0
        %v364 = vadd.f32 %v362, %v363
        %365 = vadd.xlane.f32.xlu0 %v364
        %v366 = vpop.xlane.xlu0 %365
        %v367 = vmul.f32 %v366, 0.00390625
        %v368 = vadd.f32 %v367, 0.001
        %v369 = vrsqrt.pop %v368
        %v370 = vmul.f32 %v332, %v369
        %v371 = vmul.f32 %v347, %v370
        %v372 = vsub.f32 %v333, %v371
        %374 = vset.pattern.permute.xlu0 0
        %375 = vperm.xlu0 %374, %v370
        %v376 = vpop.permute.xlu0 %375
        %v378 = vunpack.c.l.s4 839922192
        %v379 = vunpack.c.0.s8 %v378
        %v380 = vlaneseq
        %v381 = vshrl.u32 %v380, 7
        %v382 = vsub.s32 %v379, %v381
        %v383 = vrot.slane %v376, %v382
        %v385 = vmul.f32 %v331, %v383
        %387 = vset.pattern.permute.xlu0 0
        %388 = vperm.xlu0 %387, %v372
        %v389 = vpop.permute.xlu0 %388
        %v391 = vunpack.c.l.s4 839922192
        %v392 = vunpack.c.0.s8 %v391
        %v393 = vlaneseq
        %v394 = vshrl.u32 %v393, 7
        %v395 = vsub.s32 %v392, %v394
        %v396 = vrot.slane %v389, %v395
        %v398 = vadd.f32 %v385, %v396
        %v399 = vmax.f32 %v398, 0.0
        %v401 = vcombine.high %v399, %v399
        %vm402 = vcmask 31744
        %v404 = vsel %vm402, %v334, 0
        %v406 = vsel %vm341, %v399, 0
        %v408 = vsel %vm341, %v401, 0
        %410 = vmatprep.subr.mxu0 0.0
        %411 = vmatpush1.msra.mxu0 0.0
        %412 = vmatprep.subr.mxu0 0.0
        %413 = vmatpush1.msra.mxu0 0.0
        %414 = vmatprep.subr.mxu0 0.0
        %415 = vmatpush1.msra.mxu0 0.0
        %416 = vmatprep.subr.mxu0 0.0
        %417 = vmatpush1.msra.mxu0 0.0
        %418 = vmatprep.subr.mxu0 0.0
        %419 = vmatpush1.msra.mxu0 0.0
        %420 = vmatprep.subr.mxu0 0.0
        %421 = vmatpush1.msra.mxu0 0.0
        %422 = vmatprep.subr.mxu0 0.0
        %423 = vmatpush1.msra.mxu0 0.0
        %424 = vmatprep.subr.mxu0 0.0
        %425 = vmatpush1.msra.mxu0 0.0
        %426 = vmatprep.subr.mxu0 0.0
        %427 = vmatpush1.msra.mxu0 0.0
        %428 = vmatprep.subr.mxu0 0.0
        %429 = vmatpush1.msra.mxu0 0.0
        %430 = vmatprep.subr.mxu0 0.0
        %431 = vmatpush1.msra.mxu0 0.0
        %432 = vmatprep.subr.mxu0 0.0
        %433 = vmatpush1.msra.mxu0 0.0
        %434 = vmatprep.subr.mxu0 0.0
        %435 = vmatpush1.msra.mxu0 0.0
        %436 = vmatprep.subr.mxu0 0.0
        %437 = vmatpush1.msra.mxu0 0.0
        %438 = vmatprep.subr.mxu0 0.0
        %439 = vmatpush1.msra.mxu0 0.0
        %440 = vmatprep.subr.mxu0 %v408
        %441 = vmatpush1.msra.mxu0 %v406
        %442 = vmatprep.subr.mxu0 0.0
        %443 = vmatpush2.msra.mxu0 0.0
        %444 = vmatprep.subr.mxu0 0.0
        %445 = vmatpush2.msra.mxu0 0.0
        %446 = vmatprep.subr.mxu0 0.0
        %447 = vmatpush2.msra.mxu0 0.0
        %448 = vmatprep.subr.mxu0 0.0
        %449 = vmatpush2.msra.mxu0 0.0
        %450 = vmatprep.subr.mxu0 0.0
        %451 = vmatpush2.msra.mxu0 0.0
        %452 = vmatprep.subr.mxu0 0.0
        %453 = vmatpush2.msra.mxu0 0.0
        %454 = vmatprep.subr.mxu0 0.0
        %455 = vmatpush2.msra.mxu0 0.0
        %456 = vmatprep.subr.mxu0 0.0
        %457 = vmatpush2.msra.mxu0 0.0
        %458 = vmatprep.subr.mxu0 0.0
        %459 = vmatpush2.msra.mxu0 0.0
        %460 = vmatprep.subr.mxu0 0.0
        %461 = vmatpush2.msra.mxu0 0.0
        %462 = vmatprep.subr.mxu0 0.0
        %463 = vmatpush2.msra.mxu0 0.0
        %464 = vmatprep.subr.mxu0 0.0
        %465 = vmatpush2.msra.mxu0 0.0
        %466 = vmatprep.subr.mxu0 0.0
        %467 = vmatpush2.msra.mxu0 0.0
        %468 = vmatprep.subr.mxu0 0.0
        %469 = vmatpush2.msra.mxu0 0.0
        %470 = vmatprep.subr.mxu0 0.0
        %471 = vmatpush2.msra.mxu0 0.0
        %472 = vmatprep.subr.mxu0 0.0
        %473 = vmatpush2.msra.mxu0 0.0
        %474 = vmatprep.mubr.f32.mxu0 0.0
        %475 = vmatmul.mubr.f32.gmra.mxu0 %v404
        %v476 = vpop.f32.mrf.mxu0
        %v477 = vadd.f32 0.0, %v476
        %v478 = vpop.f32.mrf.mxu0
        %v479 = vadd.f32 0.0, %v478
        %480 = vdwg.mxu0
        %v481 = vadd.f32 %v477, %v479
        %482 = vadd.xlane.f32.xlu0 %v481
        %v483 = vpop.xlane.xlu0 %482
        %v484 = vmul.f32 %v483, 0.00390625
        %v485 = vsub.f32 %v477, %v484
        %v486 = vsub.f32 %v479, %v484
        %v487 = vmul.f32 %v485, %v485
        %v488 = vmul.f32 %v486, %v486
        %v489 = vadd.f32 %v487, %v488
        %490 = vadd.xlane.f32.xlu0 %v489
        %v491 = vpop.xlane.xlu0 %490
        %v492 = vmul.f32 %v491, 0.00390625
        %v493 = vadd.f32 %v492, 0.001
        %v494 = vrsqrt.pop %v493
        %v495 = vmul.f32 %v335, %v494
        %v496 = vmul.f32 %v484, %v495
        %v497 = vsub.f32 %v336, %v496
        %499 = vset.pattern.permute.xlu0 0
        %500 = vperm.xlu0 %499, %v495
        %v501 = vpop.permute.xlu0 %500
        %v503 = vmul.f32 %v477, %v501
        %v504 = vmul.f32 %v479, %v501
        %506 = vset.pattern.permute.xlu0 0
        %507 = vperm.xlu0 %506, %v497
        %v508 = vpop.permute.xlu0 %507
        %v510 = vadd.f32 %v503, %v508
        %v511 = vadd.f32 %v504, %v508
        %v512 = vmax.f32 %v510, 0.0
        %v513 = vmax.f32 %v511, 0.0
        %vm514 = vcmask 64512
        %v516 = vsel %vm514, %v337, 0
        %518 = vmatprep.subr.mxu0 0.0
        %519 = vmatpush1.msra.mxu0 0.0
        %520 = vmatprep.subr.mxu0 0.0
        %521 = vmatpush1.msra.mxu0 0.0
        %522 = vmatprep.subr.mxu0 0.0
        %523 = vmatpush1.msra.mxu0 0.0
        %524 = vmatprep.subr.mxu0 0.0
        %525 = vmatpush1.msra.mxu0 0.0
        %526 = vmatprep.subr.mxu0 0.0
        %527 = vmatpush1.msra.mxu0 0.0
        %528 = vmatprep.subr.mxu0 0.0
        %529 = vmatpush1.msra.mxu0 0.0
        %530 = vmatprep.subr.mxu0 0.0
        %531 = vmatpush1.msra.mxu0 0.0
        %532 = vmatprep.subr.mxu0 0.0
        %533 = vmatpush1.msra.mxu0 0.0
        %534 = vmatprep.subr.mxu0 0.0
        %535 = vmatpush1.msra.mxu0 0.0
        %536 = vmatprep.subr.mxu0 0.0
        %537 = vmatpush1.msra.mxu0 0.0
        %538 = vmatprep.subr.mxu0 0.0
        %539 = vmatpush1.msra.mxu0 0.0
        %540 = vmatprep.subr.mxu0 0.0
        %541 = vmatpush1.msra.mxu0 0.0
        %542 = vmatprep.subr.mxu0 0.0
        %543 = vmatpush1.msra.mxu0 0.0
        %544 = vmatprep.subr.mxu0 0.0
        %545 = vmatpush1.msra.mxu0 0.0
        %546 = vmatprep.subr.mxu0 0.0
        %547 = vmatpush1.msra.mxu0 0.0
        %548 = vmatprep.subr.mxu0 %v513
        %549 = vmatpush1.msra.mxu0 %v512
        %550 = vmatprep.subr.mxu0 0.0
        %551 = vmatpush2.msra.mxu0 0.0
        %552 = vmatprep.subr.mxu0 0.0
        %553 = vmatpush2.msra.mxu0 0.0
        %554 = vmatprep.subr.mxu0 0.0
        %555 = vmatpush2.msra.mxu0 0.0
        %556 = vmatprep.subr.mxu0 0.0
        %557 = vmatpush2.msra.mxu0 0.0
        %558 = vmatprep.subr.mxu0 0.0
        %559 = vmatpush2.msra.mxu0 0.0
        %560 = vmatprep.subr.mxu0 0.0
        %561 = vmatpush2.msra.mxu0 0.0
        %562 = vmatprep.subr.mxu0 0.0
        %563 = vmatpush2.msra.mxu0 0.0
        %564 = vmatprep.subr.mxu0 0.0
        %565 = vmatpush2.msra.mxu0 0.0
        %566 = vmatprep.subr.mxu0 0.0
        %567 = vmatpush2.msra.mxu0 0.0
        %568 = vmatprep.subr.mxu0 0.0
        %569 = vmatpush2.msra.mxu0 0.0
        %570 = vmatprep.subr.mxu0 0.0
        %571 = vmatpush2.msra.mxu0 0.0
        %572 = vmatprep.subr.mxu0 0.0
        %573 = vmatpush2.msra.mxu0 0.0
        %574 = vmatprep.subr.mxu0 0.0
        %575 = vmatpush2.msra.mxu0 0.0
        %576 = vmatprep.subr.mxu0 0.0
        %577 = vmatpush2.msra.mxu0 0.0
        %578 = vmatprep.subr.mxu0 0.0
        %579 = vmatpush2.msra.mxu0 0.0
        %580 = vmatprep.subr.mxu0 0.0
        %581 = vmatpush2.msra.mxu0 0.0
        %582 = vmatprep.mubr.f32.mxu0 0.0
        %583 = vmatmul.mubr.f32.gmra.mxu0 %v516
        %v584 = vpop.f32.mrf.mxu0
        %v585 = vadd.f32 0.0, %v584
        %v586 = vpop.f32.mrf.mxu0
        %v587 = vadd.f32 0.0, %v586
        %588 = vdwg.mxu0
        %v589 = vld [vmem:[%s8] sm:$0xff]
        %v591 = vsel %vm402, %v589, 0
        %v593 = vsel %vm341, %v331, 0
        %v595 = vsel %vm341, %v339, 0
        %597 = vmatprep.subr.mxu0 0.0
        %598 = vmatpush1.msra.mxu0 0.0
        %599 = vmatprep.subr.mxu0 0.0
        %600 = vmatpush1.msra.mxu0 0.0
        %601 = vmatprep.subr.mxu0 0.0
        %602 = vmatpush1.msra.mxu0 0.0
        %603 = vmatprep.subr.mxu0 0.0
        %604 = vmatpush1.msra.mxu0 0.0
        %605 = vmatprep.subr.mxu0 0.0
        %606 = vmatpush1.msra.mxu0 0.0
        %607 = vmatprep.subr.mxu0 0.0
        %608 = vmatpush1.msra.mxu0 0.0
        %609 = vmatprep.subr.mxu0 0.0
        %610 = vmatpush1.msra.mxu0 0.0
        %611 = vmatprep.subr.mxu0 0.0
        %612 = vmatpush1.msra.mxu0 0.0
        %613 = vmatprep.subr.mxu0 0.0
        %614 = vmatpush1.msra.mxu0 0.0
        %615 = vmatprep.subr.mxu0 0.0
        %616 = vmatpush1.msra.mxu0 0.0
        %617 = vmatprep.subr.mxu0 0.0
        %618 = vmatpush1.msra.mxu0 0.0
        %619 = vmatprep.subr.mxu0 0.0
        %620 = vmatpush1.msra.mxu0 0.0
        %621 = vmatprep.subr.mxu0 0.0
        %622 = vmatpush1.msra.mxu0 0.0
        %623 = vmatprep.subr.mxu0 0.0
        %624 = vmatpush1.msra.mxu0 0.0
        %625 = vmatprep.subr.mxu0 0.0
        %626 = vmatpush1.msra.mxu0 0.0
        %627 = vmatprep.subr.mxu0 %v595
        %628 = vmatpush1.msra.mxu0 %v593
        %629 = vmatprep.subr.mxu0 0.0
        %630 = vmatpush2.msra.mxu0 0.0
        %631 = vmatprep.subr.mxu0 0.0
        %632 = vmatpush2.msra.mxu0 0.0
        %633 = vmatprep.subr.mxu0 0.0
        %634 = vmatpush2.msra.mxu0 0.0
        %635 = vmatprep.subr.mxu0 0.0
        %636 = vmatpush2.msra.mxu0 0.0
        %637 = vmatprep.subr.mxu0 0.0
        %638 = vmatpush2.msra.mxu0 0.0
        %639 = vmatprep.subr.mxu0 0.0
        %640 = vmatpush2.msra.mxu0 0.0
        %641 = vmatprep.subr.mxu0 0.0
        %642 = vmatpush2.msra.mxu0 0.0
        %643 = vmatprep.subr.mxu0 0.0
        %644 = vmatpush2.msra.mxu0 0.0
        %645 = vmatprep.subr.mxu0 0.0
        %646 = vmatpush2.msra.mxu0 0.0
        %647 = vmatprep.subr.mxu0 0.0
        %648 = vmatpush2.msra.mxu0 0.0
        %649 = vmatprep.subr.mxu0 0.0
        %650 = vmatpush2.msra.mxu0 0.0
        %651 = vmatprep.subr.mxu0 0.0
        %652 = vmatpush2.msra.mxu0 0.0
        %653 = vmatprep.subr.mxu0 0.0
        %654 = vmatpush2.msra.mxu0 0.0
        %655 = vmatprep.subr.mxu0 0.0
        %656 = vmatpush2.msra.mxu0 0.0
        %657 = vmatprep.subr.mxu0 0.0
        %658 = vmatpush2.msra.mxu0 0.0
        %659 = vmatprep.subr.mxu0 0.0
        %660 = vmatpush2.msra.mxu0 0.0
        %661 = vmatprep.mubr.f32.mxu0 0.0
        %662 = vmatmul.mubr.f32.gmra.mxu0 %v591
        %v663 = vpop.f32.mrf.mxu0
        %v664 = vadd.f32 %v585, %v663
        %v665 = vpop.f32.mrf.mxu0
        %v666 = vadd.f32 %v587, %v665
        %667 = vdwg.mxu0
        %v668 = vld [vmem:[%s7] sm:$0xff]
        %670 = vset.pattern.permute.xlu0 0
        %671 = vperm.xlu0 %670, %v668
        %v672 = vpop.permute.xlu0 %671
        %v674 = vadd.f32 %v664, %v672
        %v675 = vadd.f32 %v666, %v672
        %676 = vst [vmem:[%s325] sm:$0xff] %v674
        %677 = vst [vmem:[%s325 + $0x8] sm:$0xff] %v675
        %s678 = sand.u32 %s225, 1
        %s679 = scalar_lea.sflag [#allocation3], %s678
        %s680 = sand.u32 %s225, 1
        %s681 = smul.addr %s680, 16
        %s682 = scalar_lea.vmem [#allocation2], %s681
        // Predicated region
        $region57: #{tpu_custom_call.1} parent=55 // pred_check
          %p683 = pneg %p235
        $region58: #{tpu_custom_call.1} parent=55 // pred_check_branch
          %685 = sbr.rel (%p683) target = $region60
        $region59: #{tpu_custom_call.1} parent=55 // pred_region
          %s687 = ssub.s32 256, 256
          %688 = vsyncadd %s679, %s687
          %s689 = smul.addr %s23, 2
          %s690 = smul.addr %s689, 128
          %s691 = scalar_lea.hbm %s9, %s690
          %s693 = sshll.u32 %s682, 4
          %s694 = int_to_ptr.vmem [resolvable:$true] %s693
          %696 = dma.vmem_to_hbm [thread:$0]  %s694, 256, %s691, %s679
        $region60: #{tpu_custom_call.1} parent=55 // pred_fallthru
          _
      $region56: #{tpu_custom_call.1} parent=5 // pred_fallthru
        _
      %p697 = scmp.le.s32.totalorder 2, %s18
      // Predicated region
      $region61: #{tpu_custom_call.1} parent=5 // pred_check
        %p698 = pneg %p697
      $region62: #{tpu_custom_call.1} parent=5 // pred_check_branch
        %700 = sbr.rel (%p698) target = $region64
      $region63: #{tpu_custom_call.1} parent=5 // pred_region
        %s701 = ssub.s32 %s18, 2
        // Predicated region
        $region65: #{tpu_custom_call.1} parent=63 // pred_check
          %p702 = pneg %p241
        $region66: #{tpu_custom_call.1} parent=63 // pred_check_branch
          %704 = sbr.rel (%p702) target = $region68
        $region67: #{tpu_custom_call.1} parent=63 // pred_region
          %s705 = sand.u32 %s226, 1
          %s706 = scalar_lea.sflag [#allocation3], %s705
          %s707 = sand.u32 %s226, 1
          %s708 = smul.addr %s707, 16
          %s709 = scalar_lea.vmem [#allocation2], %s708
          %710 = dma.done %s706, 256
        $region68: #{tpu_custom_call.1} parent=63 // pred_fallthru
          _
      $region64: #{tpu_custom_call.1} parent=5 // pred_fallthru
        _
    $region6: #{tpu_custom_call.1} parent=1 // loop_footer
      %s22 = sadd.s32 1, %s18
    $region7: #{tpu_custom_call.1} parent=1 // loop_footer_branch
      %17 = sbr.rel target = $region3
    $region8: #{tpu_custom_call.1} parent=1 // loop_exit
      _
    %711 = vsyncpa [#allocation3], 1
    %s712 = scalar_lea.sflag [#allocation3], 1
    %713 = vsyncpa %s712, 1

</llo_original>
